<compile_context>
chip_gen: v7x
topology: tpu7x:2x2x1
jax: 0.10.0
libtpu: 0.0.40
codegen_flags: <defaults>
</compile_context>

<pallas_src>
import math
import functools

import jax
import jax.numpy as jnp
from jax import lax
from jax.experimental import pallas as pl
from jax.experimental.pallas import tpu as pltpu

_SQRT_2_OVER_PI = math.sqrt(2.0 / math.pi)


def _gelu_tanh(x):
    # 0.5 * x * (1 + tanh(sqrt(2/pi) * (x + 0.044715 * x^3)))   (computed in f32)
    return 0.5 * x * (1.0 + jnp.tanh(_SQRT_2_OVER_PI * (x + 0.044715 * x * x * x)))


def _conv_embed_kernel(x_ref, w_ref, b_ref, o_ref, xp_ref, *,
                       K, pad, T, T_tile, T_pad_full, cdtype):
    """One (batch, time-tile) grid step.

    x_ref : (1, T, D)          unpadded input for this batch row (f32)
    w_ref : (K*D, D)           fused per-tap block-diagonal weights (bf16)
    b_ref : (1, D)             conv bias (f32)
    o_ref : (1, T_tile, D)     output tile
    xp_ref: (T_pad_full, D)    VMEM scratch: zero-padded (time) copy of the input (f32)
    """
    D = x_ref.shape[2]

    # ---- build the zero-padded time axis in VMEM (no HBM-side jnp.pad) ----
    if pad > 0:
        xp_ref[:pad, :] = jnp.zeros((pad, D), jnp.float32)
    tail = T_pad_full - pad - T
    if tail > 0:
        xp_ref[pad + T:, :] = jnp.zeros((tail, D), jnp.float32)
    xp_ref[pad:pad + T, :] = x_ref[0].astype(jnp.float32)

    # ---- im2col: stack the K time-shifted windows along the contraction axis ----
    base = pl.program_id(1) * T_tile
    if T_tile % 8 == 0:
        base = pl.multiple_of(base, 8)
    lhs = jnp.concatenate(
        [xp_ref[pl.ds(base + k, T_tile), :] for k in range(K)], axis=1)   # (T_tile, K*D)

    # ---- single wide MXU contraction, f32 accumulation ----
    acc = jnp.dot(lhs.astype(cdtype), w_ref[...],
                  preferred_element_type=jnp.float32)                      # (T_tile, D)

    # ---- bias + GELU in f32, store ----
    acc = acc + b_ref[...]
    o_ref[0] = _gelu_tanh(acc).astype(o_ref.dtype)


def conv_embedding_forward(x, weight_v, weight_g, bias, *, kernel_size, groups,
                           compute_dtype=jnp.bfloat16, t_tile=256):
    """x: (B, T, D) float32. Returns (B, T_out, D) where T_out drops the last step
    when kernel_size is even (PadLayer semantics)."""
    B, T, D = x.shape
    K = kernel_size
    G = groups
    assert D % G == 0
    cin_g = D // G
    cout_g = D // G
    pad = K // 2
    num_pad_remove = 1 if K % 2 == 0 else 0            # PadLayer
    T_out = T + 2 * pad - K + 1 - num_pad_remove       # == T for both even and odd K

    # ---- weight_norm(dim=2): w = g * v / ||v||  (norm over dims 0,1, per kernel tap) ----
    norm = jnp.sqrt(jnp.sum(weight_v * weight_v, axis=(0, 1), keepdims=True))
    weight = weight_g * weight_v / jnp.maximum(norm, 1e-12)   # (D, cin_g, K) torch (O, I/g, K)

    # ---- fused per-tap block-diagonal RHS: (K*D_in, D_out), cast to bf16 ----
    w_grp = weight.reshape(G, cout_g, cin_g, K)               # (G, Co_g, Ci_g, K)
    w_full = jnp.zeros((K, D, D), jnp.float32)
    for g in range(G):
        blk = jnp.transpose(w_grp[g], (2, 1, 0))              # (K, Ci_g, Co_g)
        w_full = w_full.at[:, g * cin_g:(g + 1) * cin_g,
                              g * cout_g:(g + 1) * cout_g].set(blk)
    w_fused = w_full.reshape(K * D, D).astype(compute_dtype)

    # ---- time tiling ----
    T_tile = min(t_tile, T_out)
    if T_tile % 8 != 0:              # keep layout-legal: multiple of 8 or the full dim
        T_tile = T_out
    nT = pl.cdiv(T_out, T_tile)
    # padded-scratch length: covers the largest window read (base + K - 1 + T_tile rows)
    T_pad_full = nT * T_tile + K - 1

    bias2d = bias.reshape(1, D).astype(jnp.float32)

    kernel = functools.partial(_conv_embed_kernel, K=K, pad=pad, T=T,
                               T_tile=T_tile, T_pad_full=T_pad_full,
                               cdtype=compute_dtype)

    out = pl.pallas_call(
        kernel,
        out_shape=jax.ShapeDtypeStruct((B, T_out, D), x.dtype),
        grid_spec=pltpu.PrefetchScalarGridSpec(
            num_scalar_prefetch=0,
            grid=(B, nT),
            in_specs=[
                # unpadded input, full time per batch row (constant over the t axis)
                pl.BlockSpec((1, T, D), lambda b, t: (b, 0, 0)),
                # fused weights / bias: constant blocks
                pl.BlockSpec((K * D, D), lambda b, t: (0, 0)),
                pl.BlockSpec((1, D), lambda b, t: (0, 0)),
            ],
            out_specs=pl.BlockSpec((1, T_tile, D), lambda b, t: (b, t, 0)),
            scratch_shapes=[pltpu.VMEM((T_pad_full, D), jnp.float32)],
        ),
        compiler_params=pltpu.CompilerParams(
            dimension_semantics=("parallel", "parallel"),
            vmem_limit_bytes=32 * 1024 * 1024),
    )(x, w_fused, bias2d)
    return out


def _reference_forward(x, weight_v, weight_g, bias, *, kernel_size, groups):
    """Pure-JAX f32 reference matching the PyTorch module semantics."""
    K = kernel_size
    pad = K // 2
    norm = jnp.sqrt(jnp.sum(weight_v * weight_v, axis=(0, 1), keepdims=True))
    weight = weight_g * weight_v / jnp.maximum(norm, 1e-12)   # (O, I/g, K)
    x_nct = jnp.transpose(x, (0, 2, 1))                       # (B, D, T)
    y = lax.conv_general_dilated(
        x_nct, weight,
        window_strides=(1,),
        padding=[(pad, pad)],
        dimension_numbers=("NCH", "OIH", "NCH"),
        feature_group_count=groups,
    ) + bias[None, :, None]
    if K % 2 == 0:
        y = y[:, :, :-1]                                      # PadLayer
    y = _gelu_tanh(y)
    return jnp.transpose(y, (0, 2, 1))                        # (B, T_out, D)


if __name__ == "__main__":
    # Small config consistent with the module: dimension=32, K=8 (even -> PadLayer drops
    # the last step), groups=4, batch=2, seq=16.
    B, T, D = 2, 16, 32
    K, G = 8, 4

    key = jax.random.PRNGKey(0)
    kx, kv, kb = jax.random.split(key, 3)

    x = jax.random.normal(kx, (B, T, D), jnp.float32)
    weight_v = 0.1 * jax.random.normal(kv, (D, D // G, K), jnp.float32)   # Conv1d (O, I/g, K)
    # weight_norm init: g = ||v|| over all dims except dim=2 -> shape (1, 1, K)
    weight_g = jnp.sqrt(jnp.sum(weight_v * weight_v, axis=(0, 1), keepdims=True))
    bias = 0.05 * jax.random.normal(kb, (D,), jnp.float32)

    out = conv_embedding_forward(x, weight_v, weight_g, bias,
                                 kernel_size=K, groups=G)
    out = jax.block_until_ready(out)

    ref = _reference_forward(x, weight_v, weight_g, bias,
                             kernel_size=K, groups=G)
    assert out.shape == (B, T, D), out.shape
    err = float(jnp.max(jnp.abs(out - ref)))
    # bf16 matmul operands vs f32 reference -> allow a few e-3 of rounding noise.
    assert err < 2e-2, err

    print("KERNEL_OK")
</pallas_src>

<mosaic_0001>
module attributes {stable_mosaic.version = 11 : i64} {
  func.func @_conv_embed_kernel(%arg0: i32, %arg1: i32, %arg2: memref<1x16x32xf32, #tpu.memory_space<vmem>>, %arg3: memref<256x32xbf16, #tpu.memory_space<vmem>>, %arg4: memref<1x32xf32, #tpu.memory_space<vmem>>, %arg5: memref<1x16x32xf32, #tpu.memory_space<vmem>>, %arg6: memref<23x32xf32, #tpu.memory_space<vmem>>) attributes {dimension_semantics = [#tpu.dimension_semantics<parallel>, #tpu.dimension_semantics<parallel>], iteration_bounds = array<i64: 2, 1>, scalar_prefetch = 0 : i64, scratch_operands = 1 : i64, tpu.core_type = #tpu.core_type<tc>, window_params = [{transform_indices = @transform_0, window_bounds = array<i64: 1, 16, 32>}, {pipeline_mode = #tpu.pipeline_mode<synchronous>, transform_indices = @transform_1, window_bounds = array<i64: 256, 32>}, {pipeline_mode = #tpu.pipeline_mode<synchronous>, transform_indices = @transform_2, window_bounds = array<i64: 1, 32>}, {transform_indices = @transform_3, window_bounds = array<i64: 1, 16, 32>}]} {
    %cst = arith.constant 0.000000e+00 : f32
    %0 = vector.broadcast %cst : f32 to vector<4x32xf32>
    %c0 = arith.constant 0 : index
    %c0_0 = arith.constant 0 : index
    %1 = vector.load %arg6[%c0, %c0_0] : memref<23x32xf32, #tpu.memory_space<vmem>>, vector<4x32xf32>
    tpu.vector_store %arg6[%c0, %c0_0], %0 {strides = array<i32>} : memref<23x32xf32, #tpu.memory_space<vmem>>, vector<4x32xf32>,
    %cst_1 = arith.constant 0.000000e+00 : f32
    %2 = vector.broadcast %cst_1 : f32 to vector<3x32xf32>
    %c20 = arith.constant 20 : index
    %c0_2 = arith.constant 0 : index
    %3 = vector.load %arg6[%c20, %c0_2] : memref<23x32xf32, #tpu.memory_space<vmem>>, vector<3x32xf32>
    tpu.vector_store %arg6[%c20, %c0_2], %2 {strides = array<i32>} : memref<23x32xf32, #tpu.memory_space<vmem>>, vector<3x32xf32>,
    %c0_3 = arith.constant 0 : index
    %c0_4 = arith.constant 0 : index
    %c0_5 = arith.constant 0 : index
    %4 = vector.load %arg2[%c0_3, %c0_4, %c0_5] : memref<1x16x32xf32, #tpu.memory_space<vmem>>, vector<1x16x32xf32>
    %5 = vector.shape_cast %4 : vector<1x16x32xf32> to vector<16x32xf32>
    %c4 = arith.constant 4 : index
    %c0_6 = arith.constant 0 : index
    %6 = vector.load %arg6[%c4, %c0_6] : memref<23x32xf32, #tpu.memory_space<vmem>>, vector<16x32xf32>
    tpu.vector_store %arg6[%c4, %c0_6], %5 {strides = array<i32>} : memref<23x32xf32, #tpu.memory_space<vmem>>, vector<16x32xf32>,
    %c16_i32 = arith.constant 16 : i32
    %7 = arith.muli %arg1, %c16_i32 : i32
    %8 = tpu.assume_multiple %7, 8 : i32
    %c0_i32 = arith.constant 0 : i32
    %9 = arith.addi %8, %c0_i32 : i32
    %10 = arith.index_cast %9 : i32 to index
    %c0_7 = arith.constant 0 : index
    %11 = vector.load %arg6[%10, %c0_7] : memref<23x32xf32, #tpu.memory_space<vmem>>, vector<16x32xf32>
    %c1_i32 = arith.constant 1 : i32
    %12 = arith.addi %8, %c1_i32 : i32
    %13 = arith.index_cast %12 : i32 to index
    %c0_8 = arith.constant 0 : index
    %14 = vector.load %arg6[%13, %c0_8] : memref<23x32xf32, #tpu.memory_space<vmem>>, vector<16x32xf32>
    %c2_i32 = arith.constant 2 : i32
    %15 = arith.addi %8, %c2_i32 : i32
    %16 = arith.index_cast %15 : i32 to index
    %c0_9 = arith.constant 0 : index
    %17 = vector.load %arg6[%16, %c0_9] : memref<23x32xf32, #tpu.memory_space<vmem>>, vector<16x32xf32>
    %c3_i32 = arith.constant 3 : i32
    %18 = arith.addi %8, %c3_i32 : i32
    %19 = arith.index_cast %18 : i32 to index
    %c0_10 = arith.constant 0 : index
    %20 = vector.load %arg6[%19, %c0_10] : memref<23x32xf32, #tpu.memory_space<vmem>>, vector<16x32xf32>
    %c4_i32 = arith.constant 4 : i32
    %21 = arith.addi %8, %c4_i32 : i32
    %22 = arith.index_cast %21 : i32 to index
    %c0_11 = arith.constant 0 : index
    %23 = vector.load %arg6[%22, %c0_11] : memref<23x32xf32, #tpu.memory_space<vmem>>, vector<16x32xf32>
    %c5_i32 = arith.constant 5 : i32
    %24 = arith.addi %8, %c5_i32 : i32
    %25 = arith.index_cast %24 : i32 to index
    %c0_12 = arith.constant 0 : index
    %26 = vector.load %arg6[%25, %c0_12] : memref<23x32xf32, #tpu.memory_space<vmem>>, vector<16x32xf32>
    %c6_i32 = arith.constant 6 : i32
    %27 = arith.addi %8, %c6_i32 : i32
    %28 = arith.index_cast %27 : i32 to index
    %c0_13 = arith.constant 0 : index
    %29 = vector.load %arg6[%28, %c0_13] : memref<23x32xf32, #tpu.memory_space<vmem>>, vector<16x32xf32>
    %c7_i32 = arith.constant 7 : i32
    %30 = arith.addi %8, %c7_i32 : i32
    %31 = arith.index_cast %30 : i32 to index
    %c0_14 = arith.constant 0 : index
    %32 = vector.load %arg6[%31, %c0_14] : memref<23x32xf32, #tpu.memory_space<vmem>>, vector<16x32xf32>
    %33 = tpu.concatenate %11, %14, %17, %20, %23, %26, %29, %32 in 1 : vector<16x32xf32>, vector<16x32xf32>, vector<16x32xf32>, vector<16x32xf32>, vector<16x32xf32>, vector<16x32xf32>, vector<16x32xf32>, vector<16x32xf32> -> vector<16x256xf32>
    %34 = arith.truncf %33 : vector<16x256xf32> to vector<16x256xbf16>
    %c0_15 = arith.constant 0 : index
    %c0_16 = arith.constant 0 : index
    %35 = vector.load %arg3[%c0_15, %c0_16] : memref<256x32xbf16, #tpu.memory_space<vmem>>, vector<256x32xbf16>
    %cst_17 = arith.constant dense<0.000000e+00> : vector<16x32xf32>
    %36 = tpu.matmul %34, %35, %cst_17 {dimension_numbers = #tpu.dot_dimension_numbers<[1], [0], [0], [1], [0, 0, 1, 1], [], []>} : vector<16x256xbf16>, vector<256x32xbf16>, vector<16x32xf32> -> vector<16x32xf32>
    %c0_18 = arith.constant 0 : index
    %c0_19 = arith.constant 0 : index
    %37 = vector.load %arg4[%c0_18, %c0_19] : memref<1x32xf32, #tpu.memory_space<vmem>>, vector<1x32xf32>
    %38 = vector.broadcast %37 : vector<1x32xf32> to vector<16x32xf32>
    %39 = arith.addf %36, %38 : vector<16x32xf32>
    %cst_20 = arith.constant 5.000000e-01 : f32
    %40 = vector.broadcast %cst_20 : f32 to vector<16x32xf32>
    %41 = arith.mulf %40, %39 : vector<16x32xf32>
    %cst_21 = arith.constant 4.471500e-02 : f32
    %42 = vector.broadcast %cst_21 : f32 to vector<16x32xf32>
    %43 = arith.mulf %42, %39 : vector<16x32xf32>
    %44 = arith.mulf %43, %39 : vector<16x32xf32>
    %45 = arith.mulf %44, %39 : vector<16x32xf32>
    %46 = arith.addf %39, %45 : vector<16x32xf32>
    %cst_22 = arith.constant 0.797884583 : f32
    %47 = vector.broadcast %cst_22 : f32 to vector<16x32xf32>
    %48 = arith.mulf %47, %46 : vector<16x32xf32>
    %49 = math.tanh %48 : vector<16x32xf32>
    %cst_23 = arith.constant 1.000000e+00 : f32
    %50 = vector.broadcast %cst_23 : f32 to vector<16x32xf32>
    %51 = arith.addf %50, %49 : vector<16x32xf32>
    %52 = arith.mulf %41, %51 : vector<16x32xf32>
    %c0_24 = arith.constant 0 : index
    %c0_25 = arith.constant 0 : index
    %c0_26 = arith.constant 0 : index
    %53 = vector.load %arg5[%c0_24, %c0_25, %c0_26] : memref<1x16x32xf32, #tpu.memory_space<vmem>>, vector<1x16x32xf32>
    %54 = vector.shape_cast %53 : vector<1x16x32xf32> to vector<16x32xf32>
    %55 = vector.shape_cast %52 : vector<16x32xf32> to vector<1x16x32xf32>
    tpu.vector_store %arg5[%c0_24, %c0_25, %c0_26], %55 {strides = array<i32>} : memref<1x16x32xf32, #tpu.memory_space<vmem>>, vector<1x16x32xf32>,
    return
  }
  func.func @transform_0(%arg0: i32, %arg1: i32) -> (i32, i32, i32) {
    %c0_i32 = arith.constant 0 : i32
    %c0_i32_0 = arith.constant 0 : i32
    %c0_i32_1 = arith.constant 0 : i32
    return %arg0, %c0_i32, %c0_i32_0 : i32, i32, i32
  }
  func.func @transform_1(%arg0: i32, %arg1: i32) -> (i32, i32) {
    %c0_i32 = arith.constant 0 : i32
    %c0_i32_0 = arith.constant 0 : i32
    %c0_i32_1 = arith.constant 0 : i32
    return %c0_i32, %c0_i32_0 : i32, i32
  }
  func.func @transform_2(%arg0: i32, %arg1: i32) -> (i32, i32) {
    %c0_i32 = arith.constant 0 : i32
    %c0_i32_0 = arith.constant 0 : i32
    %c0_i32_1 = arith.constant 0 : i32
    return %c0_i32, %c0_i32_0 : i32, i32
  }
  func.func @transform_3(%arg0: i32, %arg1: i32) -> (i32, i32, i32) {
    %c0_i32 = arith.constant 0 : i32
    %c0_i32_0 = arith.constant 0 : i32
    return %arg0, %arg1, %c0_i32 : i32, i32, i32
  }
}

</mosaic_0001>

<llo_original>
// kernel: tpu_custom_call.1
$region0: #{tpu_custom_call.1}
  #allocation0 [shape = 'u32[]', space=smem, size = 0x4, offset = 0x4, fixed_abs, tag = 'smem constant byte address 0x4 - core index']
  #allocation1 [shape = 'u32[144,128]{1,0:T(1,128)}', space=vmem, size = 0x12000, scoped, tag = 'internal scratch']
  #allocation2 [shape = 'f32[23,32]{1,0:T(8,128)}', space=vmem, size = 0x3000, scoped, tag = 'scratch operand']
  %s0 = inlined_call_operand.vmem [shape: f32[2,16,32], index: 0, kind: input, shape index: {}]
  %s1 = inlined_call_operand.vmem [shape: bf16[256,32], index: 1, kind: input, shape index: {}]
  %s2 = inlined_call_operand.vmem [shape: f32[1,32], index: 2, kind: input, shape index: {}]
  %s3 = inlined_call_operand.hbm [shape: f32[2,16,32], index: 3, kind: output, shape index: {}]
  %s4 = sld [smem:[#allocation0]]
  $region45: #{tpu_custom_call.1} parent=0
    _
  %s6 = ssub.s32 1, %s4
  %s7 = scalar_select 0, %s6, %s4
  $region1: #{tpu_custom_call.1} parent=0
    #allocation3 [shape = 'u8[16384]{0}', space=vmem, size = 0x4000, scoped, tag = 'output window, operand 0']
    #allocation4 [shape = 's32[2]{0}', space=sflag, size = 0x8, scoped, tag = 'scoped memory for tpu_custom_call.1']
    %8 = vsyncpa [#allocation4], 0
    %s9 = scalar_lea.sflag [#allocation4], 1
    %10 = vsyncpa %s9, 0
    loop: start=0, step=1, limit=4
    $region2: #{tpu_custom_call.1} parent=1 // loop_pre_header
      _
    $region3: #{tpu_custom_call.1} parent=1 // loop_header
      %s12 = sphi 0, %s16
      %p13 = scmp.ge.s32.totalorder %s12, 4
      %s19 = sphi 0, %s31
      %s20 = sphi 0, %s27
      %s21 = sphi 0, %s19
      %s22 = sphi 0, %s20
      %s23 = sphi 0, %s21
      %s24 = sphi 0, %s22
      %s34 = sphi 0, %s36
      %s37 = sphi 0, %s34
      %s38 = sphi 0, %s37
      %s54 = sphi 0, %s38
      %s58 = sphi 0, %s58
      %s60 = sphi 0, %s58
      %s61 = sphi 0, %s60
      %s75 = sphi 0, %s61
      %s79 = sphi 0, %s79
      %s81 = sphi 0, %s79
      %s82 = sphi 0, %s81
      %s96 = sphi 0, %s82
      %s104 = sphi 0, %s106
      %s107 = sphi 0, %s104
      %s108 = sphi 0, %s107
      %s124 = sphi 0, %s108
    $region4: #{tpu_custom_call.1} parent=1 // loop_header_branch
      %15 = sbr.rel (%p13) target = $region8
    $region5: #{tpu_custom_call.1} parent=1 // loop_body
      %s17 = ssub.s32 %s12, 1
      %s18 = ssub.s32 %s12, 2
      %s25 = sadd.s32 1, %s20
      %p26 = scmp.ge.s32.totalorder %s25, 1
      %s27 = scalar_select %p26, 0, %s25
      %s28 = sadd.s32 1, %s19
      %s29 = scalar_select %p26, %s28, %s19
      %p30 = scmp.ge.s32.totalorder %s29, 2
      %s31 = scalar_select %p30, 0, %s29
      %s32 = ssub.s32 %s19, %s31
      %p33 = scmp.eq.s32.totalorder %s32, 0
      %s35 = sadd.s32 %s34, 1
      %s36 = scalar_select %p33, %s34, %s35
      %p39 = pneg %p33
      %p40 = scmp.eq.s32.totalorder %s12, 1
      %p41 = por %p39, %p40
      %p42 = scmp.ne.s32.totalorder %s34, %s37
      %p43 = scmp.eq.s32.totalorder %s12, 0
      %p44 = por %p42, %p43
      %p45 = scmp.ne.s32.totalorder %s34, %s37
      %p46 = scmp.eq.s32.totalorder %s17, 1
      %p47 = por %p45, %p46
      %p48 = scmp.ne.s32.totalorder %s37, %s38
      %p49 = scmp.eq.s32.totalorder %s17, 0
      %p50 = por %p48, %p49
      %p51 = scmp.ne.s32.totalorder %s37, %s38
      %p52 = scmp.eq.s32.totalorder %s18, 1
      %p53 = por %p51, %p52
      %p55 = scmp.ne.s32.totalorder %s38, %s54
      %p56 = scmp.eq.s32.totalorder %s18, 0
      %p57 = por %p55, %p56
      %s59 = sadd.s32 %s58, 1
      %p62 = scmp.eq.s32.totalorder %s12, 1
      %p63 = scmp.ne.s32.totalorder %s58, %s60
      %p64 = scmp.eq.s32.totalorder %s12, 0
      %p65 = por %p63, %p64
      %p66 = scmp.ne.s32.totalorder %s58, %s60
      %p67 = scmp.eq.s32.totalorder %s17, 1
      %p68 = por %p66, %p67
      %p69 = scmp.ne.s32.totalorder %s60, %s61
      %p70 = scmp.eq.s32.totalorder %s17, 0
      %p71 = por %p69, %p70
      %p72 = scmp.ne.s32.totalorder %s60, %s61
      %p73 = scmp.eq.s32.totalorder %s18, 1
      %p74 = por %p72, %p73
      %p76 = scmp.ne.s32.totalorder %s61, %s75
      %p77 = scmp.eq.s32.totalorder %s18, 0
      %p78 = por %p76, %p77
      %s80 = sadd.s32 %s79, 1
      %p83 = scmp.eq.s32.totalorder %s12, 1
      %p84 = scmp.ne.s32.totalorder %s79, %s81
      %p85 = scmp.eq.s32.totalorder %s12, 0
      %p86 = por %p84, %p85
      %p87 = scmp.ne.s32.totalorder %s79, %s81
      %p88 = scmp.eq.s32.totalorder %s17, 1
      %p89 = por %p87, %p88
      %p90 = scmp.ne.s32.totalorder %s81, %s82
      %p91 = scmp.eq.s32.totalorder %s17, 0
      %p92 = por %p90, %p91
      %p93 = scmp.ne.s32.totalorder %s81, %s82
      %p94 = scmp.eq.s32.totalorder %s18, 1
      %p95 = por %p93, %p94
      %p97 = scmp.ne.s32.totalorder %s82, %s96
      %p98 = scmp.eq.s32.totalorder %s18, 0
      %p99 = por %p97, %p98
      %s100 = ssub.s32 %s19, %s31
      %s101 = ssub.s32 %s20, %s27
      %s102 = sor.u32 %s100, %s101
      %p103 = scmp.eq.s32.totalorder %s102, 0
      %s105 = sadd.s32 %s104, 1
      %s106 = scalar_select %p103, %s104, %s105
      %p109 = pneg %p103
      %p110 = scmp.eq.s32.totalorder %s12, 1
      %p111 = por %p109, %p110
      %p112 = scmp.ne.s32.totalorder %s104, %s107
      %p113 = scmp.eq.s32.totalorder %s12, 0
      %p114 = por %p112, %p113
      %p115 = scmp.ne.s32.totalorder %s104, %s107
      %p116 = scmp.eq.s32.totalorder %s17, 1
      %p117 = por %p115, %p116
      %p118 = scmp.ne.s32.totalorder %s107, %s108
      %p119 = scmp.eq.s32.totalorder %s17, 0
      %p120 = por %p118, %p119
      %p121 = scmp.ne.s32.totalorder %s107, %s108
      %p122 = scmp.eq.s32.totalorder %s18, 1
      %p123 = por %p121, %p122
      %p125 = scmp.ne.s32.totalorder %s108, %s124
      %p126 = scmp.eq.s32.totalorder %s18, 0
      %p127 = por %p125, %p126
      %p128 = scmp.le.s32.totalorder 1, %s12
      %p129 = scmp.lt.s32.totalorder %s12, 3
      %p130 = pnand %p128, %p129
      %p131 = pneg %p130
      // Predicated region
      $region9: #{tpu_custom_call.1} parent=5 // pred_check
        _
      $region10: #{tpu_custom_call.1} parent=5 // pred_check_branch
        %133 = sbr.rel (%p130) target = $region12
      $region11: #{tpu_custom_call.1} parent=5 // pred_region
        %s134 = ssub.s32 %s12, 1
        // Predicated region
        $region13: #{tpu_custom_call.1} parent=11 // pred_check
          %p135 = pneg %p71
        $region14: #{tpu_custom_call.1} parent=11 // pred_check_branch
          %137 = sbr.rel (%p135) target = $region16
        $region15: #{tpu_custom_call.1} parent=11 // pred_region
          _
        $region16: #{tpu_custom_call.1} parent=11 // pred_fallthru
          _
        // Predicated region
        $region17: #{tpu_custom_call.1} parent=11 // pred_check
          %p138 = pneg %p92
        $region18: #{tpu_custom_call.1} parent=11 // pred_check_branch
          %140 = sbr.rel (%p138) target = $region20
        $region19: #{tpu_custom_call.1} parent=11 // pred_region
          _
        $region20: #{tpu_custom_call.1} parent=11 // pred_fallthru
          _
      $region12: #{tpu_custom_call.1} parent=5 // pred_fallthru
        _
      %p141 = scmp.lt.s32.totalorder %s12, 2
      // Predicated region
      $region21: #{tpu_custom_call.1} parent=5 // pred_check
        %p142 = pneg %p141
      $region22: #{tpu_custom_call.1} parent=5 // pred_check_branch
        %144 = sbr.rel (%p142) target = $region24
      $region23: #{tpu_custom_call.1} parent=5 // pred_region
        // Predicated region
        $region25: #{tpu_custom_call.1} parent=23 // pred_check
          %p145 = pneg %p44
        $region26: #{tpu_custom_call.1} parent=23 // pred_check_branch
          %147 = sbr.rel (%p145) target = $region28
        $region27: #{tpu_custom_call.1} parent=23 // pred_region
          %p148 = scmp.lt.s32.totalorder %s19, 1
          %s149 = scalar_select %p148, %s19, 1
          %s150 = smul.addr %s149, 2
          %s151 = smul.addr %s150, 8
          %s152 = scalar_lea.vmem %s0, %s151
        $region28: #{tpu_custom_call.1} parent=23 // pred_fallthru
          _
      $region24: #{tpu_custom_call.1} parent=5 // pred_fallthru
        _
      %p153 = scmp.le.s32.totalorder 1, %s12
      %p154 = scmp.lt.s32.totalorder %s12, 3
      %p155 = pnand %p153, %p154
      %p156 = pneg %p155
      // Predicated region
      $region29: #{tpu_custom_call.1} parent=5 // pred_check
        _
      $region30: #{tpu_custom_call.1} parent=5 // pred_check_branch
        %158 = sbr.rel (%p155) target = $region32
      $region31: #{tpu_custom_call.1} parent=5 // pred_region
        %s159 = ssub.s32 %s12, 1
        %p160 = scmp.lt.s32.totalorder %s21, 1
        %s161 = scalar_select %p160, %s21, 1
        %s162 = smul.addr %s161, 2
        %s163 = smul.addr %s162, 8
        %s164 = scalar_lea.vmem %s0, %s163
        %p165 = pneg %p50
        %p166 = pneg %p47
        %p167 = pneg %p71
        %p168 = pneg %p68
        %p169 = pneg %p92
        %p170 = pneg %p89
        %p171 = pneg %p120
        %p172 = pneg %p117
        %s173 = sand.u32 %s107, 1
        %s174 = scalar_lea.sflag [#allocation4], %s173
        %s175 = sand.u32 %s107, 1
        %s176 = smul.addr %s175, 16
        %s177 = scalar_lea.vmem [#allocation3], %s176
        %p178 = scmp.lt.s32.totalorder %s21, 1
        %s179 = scalar_select %p178, %s21, 1
        %s180 = smul.addr %s179, 2
        %s181 = smul.addr %s180, 8
        %s182 = scalar_lea.vmem %s0, %s181
        %s183 = smul.u32 2, %s22
        %vm185 = vcmask 257024
        %186 = vst.msk [vmem:[#allocation2] sm:$0xf] %vm185, 0.0
        %vm187 = vcmask 256000
        %188 = vst.msk [vmem:[#allocation2 + $0x14] sm:$0x7] %vm187, 0.0
        %v189 = vld [vmem:[%s182] sm:$0xff]
        %v190 = vld [vmem:[%s182 + $0x8] sm:$0xff]
        %vm191 = vcmask 261120
        %192 = vst.msk [vmem:[#allocation2 + $0x4] sm:$0xff] %vm191, %v189
        %193 = vst.msk [vmem:[#allocation2 + $0xc] sm:$0xff] %vm191, %v190
        %s194 = smul.u32 %s22, 16
        %s195 = scalar_lea.vmem [#allocation2], %s194
        %v196 = vld [vmem:[%s195] sm:$0xff]
        %v197 = vld [vmem:[%s195 + $0x8] sm:$0xff]
        %s198 = sadd.s32 %s194, 1
        %s199 = scalar_lea.vmem [#allocation2], %s198
        %v200 = vld [vmem:[%s199] sm:$0xff]
        %v201 = vld [vmem:[%s199 + $0x8] sm:$0xff]
        %s202 = sadd.s32 %s194, 2
        %s203 = scalar_lea.vmem [#allocation2], %s202
        %v204 = vld [vmem:[%s203] sm:$0xff]
        %v205 = vld [vmem:[%s203 + $0x8] sm:$0xff]
        %s206 = sadd.s32 %s194, 3
        %s207 = scalar_lea.vmem [#allocation2], %s206
        %v208 = vld [vmem:[%s207] sm:$0xff]
        %v209 = vld [vmem:[%s207 + $0x8] sm:$0xff]
        %s210 = sadd.s32 %s194, 4
        %s211 = scalar_lea.vmem [#allocation2], %s210
        %v212 = vld [vmem:[%s211] sm:$0xff]
        %v213 = vld [vmem:[%s211 + $0x8] sm:$0xff]
        %s214 = sadd.s32 %s194, 5
        %s215 = scalar_lea.vmem [#allocation2], %s214
        %v216 = vld [vmem:[%s215] sm:$0xff]
        %v217 = vld [vmem:[%s215 + $0x8] sm:$0xff]
        %s218 = sadd.s32 %s194, 6
        %s219 = scalar_lea.vmem [#allocation2], %s218
        %v220 = vld [vmem:[%s219] sm:$0xff]
        %v221 = vld [vmem:[%s219 + $0x8] sm:$0xff]
        %s222 = sadd.s32 %s194, 7
        %s223 = scalar_lea.vmem [#allocation2], %s222
        %v224 = vld [vmem:[%s223] sm:$0xff]
        %v225 = vld [vmem:[%s223 + $0x8] sm:$0xff]
        %228 = vrot.lane.b32.xlu0 %v200, 32
        %v229 = vpop.permute.xlu0 %228
        %230 = vrot.lane.b32.xlu0 %v201, 32
        %v231 = vpop.permute.xlu0 %230
        %236 = vrot.lane.b32.xlu0 %v204, 64
        %v237 = vpop.permute.xlu0 %236
        %238 = vrot.lane.b32.xlu0 %v205, 64
        %v239 = vpop.permute.xlu0 %238
        %244 = vrot.lane.b32.xlu0 %v208, 96
        %v245 = vpop.permute.xlu0 %244
        %246 = vrot.lane.b32.xlu0 %v209, 96
        %v247 = vpop.permute.xlu0 %246
        %252 = vrot.lane.b32.xlu0 %v216, 32
        %v253 = vpop.permute.xlu0 %252
        %254 = vrot.lane.b32.xlu0 %v217, 32
        %v255 = vpop.permute.xlu0 %254
        %260 = vrot.lane.b32.xlu0 %v220, 64
        %v261 = vpop.permute.xlu0 %260
        %262 = vrot.lane.b32.xlu0 %v221, 64
        %v263 = vpop.permute.xlu0 %262
        %268 = vrot.lane.b32.xlu0 %v224, 96
        %v269 = vpop.permute.xlu0 %268
        %270 = vrot.lane.b32.xlu0 %v225, 96
        %v271 = vpop.permute.xlu0 %270
        %v274 = vsel %vm191, %v196, %v229
        %v275 = vsel %vm191, %v197, %v231
        %vm276 = vcmask 523264
        %v277 = vsel %vm276, %v274, %v237
        %v278 = vsel %vm276, %v275, %v239
        %vm279 = vcmask 785408
        %v280 = vsel %vm279, %v277, %v245
        %v281 = vsel %vm279, %v278, %v247
        %v282 = vsel %vm191, %v212, %v253
        %v283 = vsel %vm191, %v213, %v255
        %v284 = vsel %vm276, %v282, %v261
        %v285 = vsel %vm276, %v283, %v263
        %v286 = vsel %vm279, %v284, %v269
        %v287 = vsel %vm279, %v285, %v271
        %v288 = vpack.c.bf16 %v281, %v280
        %v289 = vpack.c.bf16 %v287, %v286
        %v290 = vld [vmem:[%s1] sm:$0xf]
        %v291 = vld [vmem:[%s1 + $0x4] sm:$0xf]
        %v292 = vld [vmem:[%s1 + $0x8] sm:$0xf]
        %v293 = vld [vmem:[%s1 + $0xc] sm:$0xf]
        %v294 = vld [vmem:[%s1 + $0x10] sm:$0xf]
        %v295 = vld [vmem:[%s1 + $0x14] sm:$0xf]
        %v296 = vld [vmem:[%s1 + $0x18] sm:$0xf]
        %v297 = vld [vmem:[%s1 + $0x1c] sm:$0xf]
        %v298 = vld [vmem:[%s1 + $0x20] sm:$0xf]
        %v299 = vld [vmem:[%s1 + $0x24] sm:$0xf]
        %v300 = vld [vmem:[%s1 + $0x28] sm:$0xf]
        %v301 = vld [vmem:[%s1 + $0x2c] sm:$0xf]
        %v302 = vld [vmem:[%s1 + $0x30] sm:$0xf]
        %v303 = vld [vmem:[%s1 + $0x34] sm:$0xf]
        %v304 = vld [vmem:[%s1 + $0x38] sm:$0xf]
        %v305 = vld [vmem:[%s1 + $0x3c] sm:$0xf]
        %v306 = vld [vmem:[%s1 + $0x40] sm:$0xf]
        %v307 = vld [vmem:[%s1 + $0x44] sm:$0xf]
        %v308 = vld [vmem:[%s1 + $0x48] sm:$0xf]
        %v309 = vld [vmem:[%s1 + $0x4c] sm:$0xf]
        %v310 = vld [vmem:[%s1 + $0x50] sm:$0xf]
        %v311 = vld [vmem:[%s1 + $0x54] sm:$0xf]
        %v312 = vld [vmem:[%s1 + $0x58] sm:$0xf]
        %v313 = vld [vmem:[%s1 + $0x5c] sm:$0xf]
        %v314 = vld [vmem:[%s1 + $0x60] sm:$0xf]
        %v315 = vld [vmem:[%s1 + $0x64] sm:$0xf]
        %v316 = vld [vmem:[%s1 + $0x68] sm:$0xf]
        %v317 = vld [vmem:[%s1 + $0x6c] sm:$0xf]
        %v318 = vld [vmem:[%s1 + $0x70] sm:$0xf]
        %v319 = vld [vmem:[%s1 + $0x74] sm:$0xf]
        %v320 = vld [vmem:[%s1 + $0x78] sm:$0xf]
        %v321 = vld [vmem:[%s1 + $0x7c] sm:$0xf]
        %v322 = vld [vmem:[%s2] sm:$0x1]
        %v324 = vlaneseq
        %v325 = vshrl.u32 %v324, 7
        %v326 = vsub.s32 0, %v325
        %v327 = vrot.slane %v322, %v326
        %v361 = vunpack.c.l.b16 %v290
        %v362 = vunpack.c.l.b16 %v291
        %v363 = vunpack.c.l.b16 %v292
        %v364 = vunpack.c.l.b16 %v293
        %v365 = vunpack.c.l.b16 %v294
        %v366 = vunpack.c.l.b16 %v295
        %v367 = vunpack.c.l.b16 %v296
        %v368 = vunpack.c.l.b16 %v297
        %v369 = vunpack.c.l.b16 %v298
        %v370 = vunpack.c.l.b16 %v299
        %v371 = vunpack.c.l.b16 %v300
        %v372 = vunpack.c.l.b16 %v301
        %v373 = vunpack.c.l.b16 %v302
        %v374 = vunpack.c.l.b16 %v303
        %v375 = vunpack.c.l.b16 %v304
        %v376 = vunpack.c.l.b16 %v305
        %v377 = vunpack.c.l.b16 %v306
        %v378 = vunpack.c.l.b16 %v307
        %v379 = vunpack.c.l.b16 %v308
        %v380 = vunpack.c.l.b16 %v309
        %v381 = vunpack.c.l.b16 %v310
        %v382 = vunpack.c.l.b16 %v311
        %v383 = vunpack.c.l.b16 %v312
        %v384 = vunpack.c.l.b16 %v313
        %v385 = vunpack.c.l.b16 %v314
        %v386 = vunpack.c.l.b16 %v315
        %v387 = vunpack.c.l.b16 %v316
        %v388 = vunpack.c.l.b16 %v317
        %v389 = vunpack.c.l.b16 %v318
        %v390 = vunpack.c.l.b16 %v319
        %v391 = vunpack.c.l.b16 %v320
        %v392 = vunpack.c.l.b16 %v321
        %v393 = vpack.c.b16 %v362, %v361
        %v394 = vpack.c.b16 %v364, %v363
        %v395 = vpack.c.b16 %v366, %v365
        %v396 = vpack.c.b16 %v368, %v367
        %v397 = vpack.c.b16 %v370, %v369
        %v398 = vpack.c.b16 %v372, %v371
        %v399 = vpack.c.b16 %v374, %v373
        %v400 = vpack.c.b16 %v376, %v375
        %v401 = vpack.c.b16 %v378, %v377
        %v402 = vpack.c.b16 %v380, %v379
        %v403 = vpack.c.b16 %v382, %v381
        %v404 = vpack.c.b16 %v384, %v383
        %v405 = vpack.c.b16 %v386, %v385
        %v406 = vpack.c.b16 %v388, %v387
        %v407 = vpack.c.b16 %v390, %v389
        %v408 = vpack.c.b16 %v392, %v391
        %425 = vmatprep.subr.bf16.mxu0 0
        %426 = vmatpush1.bf16.msra.mxu0 %v393
        %427 = vmatprep.subr.bf16.mxu0 0
        %428 = vmatpush1.bf16.msra.mxu0 %v394
        %429 = vmatprep.subr.bf16.mxu0 0
        %430 = vmatpush1.bf16.msra.mxu0 %v395
        %431 = vmatprep.subr.bf16.mxu0 0
        %432 = vmatpush1.bf16.msra.mxu0 %v396
        %433 = vmatprep.subr.bf16.mxu0 0
        %434 = vmatpush1.bf16.msra.mxu0 %v397
        %435 = vmatprep.subr.bf16.mxu0 0
        %436 = vmatpush1.bf16.msra.mxu0 %v398
        %437 = vmatprep.subr.bf16.mxu0 0
        %438 = vmatpush1.bf16.msra.mxu0 %v399
        %439 = vmatprep.subr.bf16.mxu0 0
        %440 = vmatpush1.bf16.msra.mxu0 %v400
        %441 = vmatprep.subr.bf16.mxu0 0
        %442 = vmatpush1.bf16.msra.mxu0 %v401
        %443 = vmatprep.subr.bf16.mxu0 0
        %444 = vmatpush1.bf16.msra.mxu0 %v402
        %445 = vmatprep.subr.bf16.mxu0 0
        %446 = vmatpush1.bf16.msra.mxu0 %v403
        %447 = vmatprep.subr.bf16.mxu0 0
        %448 = vmatpush1.bf16.msra.mxu0 %v404
        %449 = vmatprep.subr.bf16.mxu0 0
        %450 = vmatpush1.bf16.msra.mxu0 %v405
        %451 = vmatprep.subr.bf16.mxu0 0
        %452 = vmatpush1.bf16.msra.mxu0 %v406
        %453 = vmatprep.subr.bf16.mxu0 0
        %454 = vmatpush1.bf16.msra.mxu0 %v407
        %455 = vmatprep.subr.bf16.mxu0 0
        %456 = vmatpush1.bf16.msra.mxu0 %v408
        %457 = vmatprep.mubr.bf16.mxu0 %v289
        %458 = vmatmul.mubr.bf16.gmra.mrb[0].mxu0 %v288
        %v459 = vpop.f32.mrb[0].mxu0
        %v460 = vadd.f32 %v327, %v459
        %v461 = vpop.f32.mrb[0].mxu0
        %v462 = vpop.f32.mrb[0].mxu0
        %v463 = vadd.f32 %v327, %v462
        %v464 = vpop.f32.mrb[0].mxu0
        %465 = vdwg.mxu0
        %v466 = vmul.f32 %v460, 0.5
        %v467 = vmul.f32 %v463, 0.5
        %v468 = vmul.f32 %v460, 0.044715
        %v469 = vmul.f32 %v463, 0.044715
        %v470 = vmul.f32 %v468, %v460
        %v471 = vmul.f32 %v469, %v463
        %v472 = vmul.f32 %v470, %v460
        %v473 = vmul.f32 %v471, %v463
        %v474 = vadd.f32 %v460, %v472
        %v475 = vadd.f32 %v463, %v473
        %v476 = vmul.f32 %v474, 0.7978846
        %v477 = vmul.f32 %v475, 0.7978846
        %v478 = vtanh.pop %v476
        %v479 = vtanh.pop %v477
        %v480 = vadd.f32 %v478, 1.0
        %v481 = vadd.f32 %v479, 1.0
        %v482 = vmul.f32 %v466, %v480
        %v483 = vmul.f32 %v467, %v481
        %484 = vst.msk [vmem:[%s177] sm:$0xff] %vm191, %v482
        %485 = vst.msk [vmem:[%s177 + $0x8] sm:$0xff] %vm191, %v483
        %s486 = sand.u32 %s107, 1
        %s487 = scalar_lea.sflag [#allocation4], %s486
        %s488 = sand.u32 %s107, 1
        %s489 = smul.addr %s488, 16
        %s490 = scalar_lea.vmem [#allocation3], %s489
        // Predicated region
        $region33: #{tpu_custom_call.1} parent=31 // pred_check
          %p491 = pneg %p117
        $region34: #{tpu_custom_call.1} parent=31 // pred_check_branch
          %493 = sbr.rel (%p491) target = $region36
        $region35: #{tpu_custom_call.1} parent=31 // pred_region
          %s494 = smul.u32 2, %s22
          %s496 = ssub.s32 256, 256
          %497 = vsyncadd %s487, %s496
          %s498 = smul.addr %s21, 2
          %s499 = sadd.s32 %s494, %s498
          %s500 = smul.addr %s499, 128
          %s501 = scalar_lea.hbm %s3, %s500
          %s502 = sshll.u32 %s490, 4
          %s503 = int_to_ptr.vmem [resolvable:$true] %s502
          %508 = dma.vmem_to_hbm [thread:$0]  %s503, 256, %s501, %s487, 128, 128, 8
        $region36: #{tpu_custom_call.1} parent=31 // pred_fallthru
          _
      $region32: #{tpu_custom_call.1} parent=5 // pred_fallthru
        _
      %p509 = scmp.le.s32.totalorder 2, %s12
      // Predicated region
      $region37: #{tpu_custom_call.1} parent=5 // pred_check
        %p510 = pneg %p509
      $region38: #{tpu_custom_call.1} parent=5 // pred_check_branch
        %512 = sbr.rel (%p510) target = $region40
      $region39: #{tpu_custom_call.1} parent=5 // pred_region
        %s513 = ssub.s32 %s12, 2
        // Predicated region
        $region41: #{tpu_custom_call.1} parent=39 // pred_check
          %p514 = pneg %p123
        $region42: #{tpu_custom_call.1} parent=39 // pred_check_branch
          %516 = sbr.rel (%p514) target = $region44
        $region43: #{tpu_custom_call.1} parent=39 // pred_region
          %s517 = sand.u32 %s108, 1
          %s518 = scalar_lea.sflag [#allocation4], %s517
          %s519 = sand.u32 %s108, 1
          %s520 = smul.addr %s519, 16
          %s521 = scalar_lea.vmem [#allocation3], %s520
          %522 = dma.done %s518, 256
        $region44: #{tpu_custom_call.1} parent=39 // pred_fallthru
          _
      $region40: #{tpu_custom_call.1} parent=5 // pred_fallthru
        _
    $region6: #{tpu_custom_call.1} parent=1 // loop_footer
      %s16 = sadd.s32 1, %s12
    $region7: #{tpu_custom_call.1} parent=1 // loop_footer_branch
      %11 = sbr.rel target = $region3
    $region8: #{tpu_custom_call.1} parent=1 // loop_exit
      _
    %523 = vsyncpa [#allocation4], 1
    %s524 = scalar_lea.sflag [#allocation4], 1
    %525 = vsyncpa %s524, 1

</llo_original>
